<compile_context>
chip_gen: v6e
topology: v6e:2x2x1
jax: 0.10.0
libtpu: 0.0.40
codegen_flags: <defaults>
</compile_context>

<pallas_src>
import functools
import numpy as np

import jax
import jax.numpy as jnp
from jax.experimental import pallas as pl
from jax.experimental.pallas import tpu as pltpu


# -----------------------------------------------------------------------------
# generation-aware constants
# -----------------------------------------------------------------------------
def _detect_vmem_capacity():
    try:
        info = pltpu.get_tpu_info()
        for name in ("vmem_capacity_bytes", "vmem_bytes", "vmem_size_bytes"):
            v = getattr(info, name, None)
            if v:
                return int(v)
    except Exception:
        pass
    return 64 * 1024 * 1024          # conservative default (v7x per-core VMEM)


_VMEM_CAP = _detect_vmem_capacity()
_BIG_VMEM = _VMEM_CAP >= (100 << 20)                 # v5e / v6e (128 MiB)
_VMEM_LIMIT = int(min(_VMEM_CAP * 3 // 4, 100 << 20))
_ROW_TILE_CAP = 512 if _BIG_VMEM else 256            # token-matrix kernels
_Q_TILE_CAP = 256 if _BIG_VMEM else 128              # attention query tile
_KV_CHUNK_CAP = 512                                  # in-kernel KV chunk
_PROBS_OUT_BUDGET = 16 * 1024 * 1024                 # probs double-buffer budget


def _row_tile(M):
    return M if M <= _ROW_TILE_CAP else _ROW_TILE_CAP


def _kv_chunk(S):
    if S <= _KV_CHUNK_CAP:
        return S
    for c in range(_KV_CHUNK_CAP, 127, -128):
        if S % c == 0:
            return c
    # TODO(synk): masked tail KV chunk when S has no multiple-of-128 divisor.
    return S


def _probs_q_tile(S, H):
    t = _PROBS_OUT_BUDGET // (2 * H * S * 4)
    t = max(8, (t // 8) * 8)
    t = min(t, _Q_TILE_CAP)
    return S if S <= t else t


# -----------------------------------------------------------------------------
# fused QKV projection
# -----------------------------------------------------------------------------
def _qkv_kernel(x_ref, w_ref, b_ref, oq_ref, ok_ref, ov_ref, *, q_scale):
    """acc = x @ [Wq|Wk|Wv] + b;  Q pre-scaled by 1/sqrt(Dh); three lane-dense outs."""
    acc = jnp.dot(x_ref[...], w_ref[...], preferred_element_type=jnp.float32)
    acc = acc + b_ref[...]
    d = oq_ref.shape[-1]
    oq_ref[...] = (acc[:, :d] * q_scale).astype(oq_ref.dtype)
    ok_ref[...] = (acc[:, d:2 * d]).astype(ok_ref.dtype)
    ov_ref[...] = (acc[:, 2 * d:]).astype(ov_ref.dtype)


def qkv_projection(x, w, b, q_scale):
    """x:(M,D) bf16, w:(D,3D) bf16, b:(3D,) f32 -> q,k,v each (M,D) bf16."""
    M, K = x.shape
    N3 = w.shape[1]
    D = N3 // 3
    tm = _row_tile(M)
    kernel = functools.partial(_qkv_kernel, q_scale=q_scale)
    out_sds = jax.ShapeDtypeStruct((M, D), x.dtype)
    return pl.pallas_call(
        kernel,
        out_shape=(out_sds, out_sds, out_sds),
        grid=(pl.cdiv(M, tm),),
        in_specs=[
            pl.BlockSpec((tm, K), lambda i: (i, 0)),
            pl.BlockSpec((K, N3), lambda i: (0, 0)),
            pl.BlockSpec((1, N3), lambda i: (0, 0)),
        ],
        out_specs=(
            pl.BlockSpec((tm, D), lambda i: (i, 0)),
            pl.BlockSpec((tm, D), lambda i: (i, 0)),
            pl.BlockSpec((tm, D), lambda i: (i, 0)),
        ),
        compiler_params=pltpu.CompilerParams(
            dimension_semantics=("parallel",), vmem_limit_bytes=_VMEM_LIMIT),
    )(x, w, b.reshape(1, N3))


# -----------------------------------------------------------------------------
# output projection fused with residual-add + LayerNorm
# -----------------------------------------------------------------------------
def _linear_add_ln_kernel(x_ref, w_ref, b_ref, r_ref, g_ref, be_ref, o_ref, *, eps):
    acc = jnp.dot(x_ref[...], w_ref[...], preferred_element_type=jnp.float32)
    h = acc + b_ref[...] + r_ref[...].astype(jnp.float32)
    mean = jnp.mean(h, axis=-1, keepdims=True)
    var = jnp.mean(jnp.square(h - mean), axis=-1, keepdims=True)
    y = (h - mean) * jax.lax.rsqrt(var + eps)
    o_ref[...] = (y * g_ref[...] + be_ref[...]).astype(o_ref.dtype)


def linear_add_layernorm(x, w, b, res, gamma, beta, eps):
    M, K = x.shape
    N = w.shape[1]
    tm = _row_tile(M)
    kernel = functools.partial(_linear_add_ln_kernel, eps=eps)
    return pl.pallas_call(
        kernel,
        out_shape=jax.ShapeDtypeStruct((M, N), x.dtype),
        grid=(pl.cdiv(M, tm),),
        in_specs=[
            pl.BlockSpec((tm, K), lambda i: (i, 0)),
            pl.BlockSpec((K, N), lambda i: (0, 0)),
            pl.BlockSpec((1, N), lambda i: (0, 0)),
            pl.BlockSpec((tm, N), lambda i: (i, 0)),
            pl.BlockSpec((1, N), lambda i: (0, 0)),
            pl.BlockSpec((1, N), lambda i: (0, 0)),
        ],
        out_specs=pl.BlockSpec((tm, N), lambda i: (i, 0)),
        compiler_params=pltpu.CompilerParams(
            dimension_semantics=("parallel",), vmem_limit_bytes=_VMEM_LIMIT),
    )(x, w, b.reshape(1, N), res, gamma.reshape(1, N), beta.reshape(1, N))


# -----------------------------------------------------------------------------
# fully fused FFN: relu(x@W1+b1)@W2 + b2 + residual -> LayerNorm
# -----------------------------------------------------------------------------
def _ffn_fused_kernel(x_ref, w1_ref, b1_ref, w2_ref, b2_ref, r_ref, g_ref,
                      be_ref, o_ref, *, eps):
    h = jnp.dot(x_ref[...], w1_ref[...], preferred_element_type=jnp.float32)
    h = jnp.maximum(h + b1_ref[...], 0.0)
    y = jnp.dot(h.astype(w2_ref.dtype), w2_ref[...],
                preferred_element_type=jnp.float32)
    y = y + b2_ref[...] + r_ref[...].astype(jnp.float32)
    mean = jnp.mean(y, axis=-1, keepdims=True)
    var = jnp.mean(jnp.square(y - mean), axis=-1, keepdims=True)
    out = (y - mean) * jax.lax.rsqrt(var + eps)
    o_ref[...] = (out * g_ref[...] + be_ref[...]).astype(o_ref.dtype)


def ffn_fused(x, w1, b1, w2, b2, res, gamma, beta, eps):
    """Single pallas_call FFN: the (M, ffn_dim) activation never hits HBM."""
    M, D = x.shape
    F = w1.shape[1]
    tm = _row_tile(M)
    kernel = functools.partial(_ffn_fused_kernel, eps=eps)
    return pl.pallas_call(
        kernel,
        out_shape=jax.ShapeDtypeStruct((M, D), x.dtype),
        grid=(pl.cdiv(M, tm),),
        in_specs=[
            pl.BlockSpec((tm, D), lambda i: (i, 0)),
            pl.BlockSpec((D, F), lambda i: (0, 0)),
            pl.BlockSpec((1, F), lambda i: (0, 0)),
            pl.BlockSpec((F, D), lambda i: (0, 0)),
            pl.BlockSpec((1, D), lambda i: (0, 0)),
            pl.BlockSpec((tm, D), lambda i: (i, 0)),
            pl.BlockSpec((1, D), lambda i: (0, 0)),
            pl.BlockSpec((1, D), lambda i: (0, 0)),
        ],
        out_specs=pl.BlockSpec((tm, D), lambda i: (i, 0)),
        compiler_params=pltpu.CompilerParams(
            dimension_semantics=("parallel",), vmem_limit_bytes=_VMEM_LIMIT),
    )(x, w1, b1.reshape(1, F), w2, b2.reshape(1, D), res,
      gamma.reshape(1, D), beta.reshape(1, D))


# -----------------------------------------------------------------------------
# flash attention (no probs): query-tiled grid, KV fori_loop with value carries
# -----------------------------------------------------------------------------
def _flash_attention_kernel(q_ref, k_ref, v_ref, o_ref, *, kv_chunk):
    """q_ref: (1, tq, H, Dh); k/v_ref: (1, S, H, Dh); o_ref: (1, tq, H, Dh).

    Q is pre-scaled by 1/sqrt(Dh).  All heads are processed together via
    head-batched einsums; m/l/acc are fori_loop carries (no scratch, no
    single-lane masked updates).
    """
    S = k_ref.shape[1]
    tq, H, Dh = q_ref.shape[1], q_ref.shape[2], q_ref.shape[3]
    num_kv = S // kv_chunk

    qh = jnp.swapaxes(q_ref[0], 0, 1)                      # (H, tq, Dh) bf16

    def body(c, carry):
        m, l, acc = carry                                  # (H,tq,1) (H,tq,1) (H,tq,Dh)
        start = pl.multiple_of(c * kv_chunk, kv_chunk)
        k = jnp.swapaxes(k_ref[0, pl.ds(start, kv_chunk), :, :], 0, 1)  # (H,kv,Dh)
        v = jnp.swapaxes(v_ref[0, pl.ds(start, kv_chunk), :, :], 0, 1)
        s = jnp.einsum("hqd,hkd->hqk", qh, k,
                       preferred_element_type=jnp.float32)             # (H,tq,kv)
        m_new = jnp.maximum(m, jnp.max(s, axis=-1, keepdims=True))
        alpha = jnp.exp(m - m_new)
        p = jnp.exp(s - m_new)
        l_new = alpha * l + jnp.sum(p, axis=-1, keepdims=True)
        pv = jnp.einsum("hqk,hkd->hqd", p.astype(v.dtype), v,
                        preferred_element_type=jnp.float32)            # (H,tq,Dh)
        acc_new = alpha * acc + pv
        return m_new, l_new, acc_new

    m0 = jnp.full((H, tq, 1), -jnp.inf, jnp.float32)
    l0 = jnp.zeros((H, tq, 1), jnp.float32)
    a0 = jnp.zeros((H, tq, Dh), jnp.float32)
    m, l, acc = jax.lax.fori_loop(0, num_kv, body, (m0, l0, a0))

    out = acc * pl.reciprocal(l, approx=True)              # (H, tq, Dh) f32
    o_ref[0] = jnp.transpose(out, (1, 0, 2)).astype(o_ref.dtype)


def flash_attention(q, k, v):
    """q,k,v: (B, S, H, Dh) bf16 (q pre-scaled) -> ctx (B, S, H, Dh) bf16."""
    B, S, H, Dh = q.shape
    tq = S if S <= _Q_TILE_CAP else _Q_TILE_CAP
    kv_chunk = _kv_chunk(S)
    kernel = functools.partial(_flash_attention_kernel, kv_chunk=kv_chunk)
    q_spec = pl.BlockSpec((1, tq, H, Dh), lambda b, qi: (b, qi, 0, 0))
    kv_spec = pl.BlockSpec((1, S, H, Dh), lambda b, qi: (b, 0, 0, 0))
    o_spec = pl.BlockSpec((1, tq, H, Dh), lambda b, qi: (b, qi, 0, 0))
    return pl.pallas_call(
        kernel,
        out_shape=jax.ShapeDtypeStruct((B, S, H, Dh), q.dtype),
        grid=(B, pl.cdiv(S, tq)),
        in_specs=[q_spec, kv_spec, kv_spec],
        out_specs=o_spec,
        compiler_params=pltpu.CompilerParams(
            dimension_semantics=("parallel", "parallel"),
            vmem_limit_bytes=_VMEM_LIMIT),
    )(q, k, v)


# -----------------------------------------------------------------------------
# last-layer attention: exact softmax, query-tiled probs output
# -----------------------------------------------------------------------------
def _attention_probs_kernel(q_ref, k_ref, v_ref, o_ref, p_ref):
    """Exact softmax attention, emits probs.  Probs block is (1, H, tq, S)."""
    qh = jnp.swapaxes(q_ref[0], 0, 1)                      # (H, tq, Dh)
    kh = jnp.swapaxes(k_ref[0], 0, 1)                      # (H, S, Dh)
    vh = jnp.swapaxes(v_ref[0], 0, 1)
    s = jnp.einsum("hqd,hkd->hqk", qh, kh,
                   preferred_element_type=jnp.float32)     # (H, tq, S)
    s = s - jnp.max(s, axis=-1, keepdims=True)
    e = jnp.exp(s)
    p = e * pl.reciprocal(jnp.sum(e, axis=-1, keepdims=True), approx=False)
    p_ref[0] = p.astype(p_ref.dtype)                       # lane-dense (tq, S) slabs
    ctx = jnp.einsum("hqk,hkd->hqd", p.astype(vh.dtype), vh,
                     preferred_element_type=jnp.float32)   # (H, tq, Dh)
    o_ref[0] = jnp.transpose(ctx, (1, 0, 2)).astype(o_ref.dtype)


def attention_with_probs(q, k, v):
    """q,k,v: (B,S,H,Dh) -> (ctx (B,S,H,Dh) bf16, attn_prob (B,H,S,S) f32)."""
    B, S, H, Dh = q.shape
    tq = _probs_q_tile(S, H)   # bound the (1,H,tq,S) probs block to a VMEM budget
    q_spec = pl.BlockSpec((1, tq, H, Dh), lambda b, qi: (b, qi, 0, 0))
    kv_spec = pl.BlockSpec((1, S, H, Dh), lambda b, qi: (b, 0, 0, 0))
    return pl.pallas_call(
        _attention_probs_kernel,
        out_shape=(
            jax.ShapeDtypeStruct((B, S, H, Dh), q.dtype),
            jax.ShapeDtypeStruct((B, H, S, S), jnp.float32),
        ),
        grid=(B, pl.cdiv(S, tq)),
        in_specs=[q_spec, kv_spec, kv_spec],
        out_specs=(
            pl.BlockSpec((1, tq, H, Dh), lambda b, qi: (b, qi, 0, 0)),
            pl.BlockSpec((1, H, tq, S), lambda b, qi: (b, 0, qi, 0)),
        ),
        compiler_params=pltpu.CompilerParams(
            dimension_semantics=("parallel", "parallel"),
            vmem_limit_bytes=_VMEM_LIMIT),
    )(q, k, v)


# -----------------------------------------------------------------------------
# Model glue (plain JAX): parameter setup, reshapes, layer wiring
# -----------------------------------------------------------------------------
def sinusoidal_pos_encoding(max_len, embed_dim):
    pos = np.arange(max_len, dtype=np.float32)[:, None]
    i = np.arange(0, embed_dim, 2, dtype=np.float32)[None, :]
    angle = pos / np.power(10000.0, i / float(embed_dim))
    pe = np.zeros((max_len, embed_dim), dtype=np.float32)
    pe[:, 0::2] = np.sin(angle)
    pe[:, 1::2] = np.cos(angle)
    return jnp.asarray(pe)


def init_params(key, vocab_size, num_layers, max_len, embed_dim, ffn_dim, num_heads):
    def dense(k, fan_in, fan_out):
        w = jax.random.normal(k, (fan_in, fan_out), jnp.float32) * 0.02
        return w.astype(jnp.bfloat16)          # bf16 MXU operands

    keys = jax.random.split(key, 1 + num_layers)
    params = {
        "embedding": jax.random.normal(keys[0], (vocab_size, embed_dim),
                                       jnp.float32) * 0.02,
        "pos_enc": sinusoidal_pos_encoding(max_len, embed_dim),
        "layers": [],
    }
    for l in range(num_layers):
        lk = jax.random.split(keys[1 + l], 4)
        params["layers"].append(
            {
                "wqkv": dense(lk[0], embed_dim, 3 * embed_dim),   # fused Wq|Wk|Wv
                "bqkv": jnp.zeros((3 * embed_dim,), jnp.float32),
                "wo": dense(lk[1], embed_dim, embed_dim),
                "bo": jnp.zeros((embed_dim,), jnp.float32),
                "g1": jnp.ones((embed_dim,), jnp.float32),
                "be1": jnp.zeros((embed_dim,), jnp.float32),
                "w1": dense(lk[2], embed_dim, ffn_dim),
                "b1": jnp.zeros((ffn_dim,), jnp.float32),
                "w2": dense(lk[3], ffn_dim, embed_dim),
                "b2": jnp.zeros((embed_dim,), jnp.float32),
                "g2": jnp.ones((embed_dim,), jnp.float32),
                "be2": jnp.zeros((embed_dim,), jnp.float32),
            }
        )
    return params


def encoder_layer(p, x, num_heads, eps, emit_probs):
    """x: (B, S, D) bf16 -> (out (B,S,D) bf16, attn_prob (B,H,S,S) f32 or None)."""
    B, S, D = x.shape
    M = B * S
    d_head = D // num_heads
    xf = x.reshape(M, D)

    # Fused QKV projection; 1/sqrt(Dh) folded into Q.  Heads stay a trailing
    # split of the lane-dense D dim: the (B,S,H,Dh) views below are free.
    q, k, v = qkv_projection(xf, p["wqkv"], p["bqkv"],
                             q_scale=1.0 / float(np.sqrt(d_head)))
    q4 = q.reshape(B, S, num_heads, d_head)
    k4 = k.reshape(B, S, num_heads, d_head)
    v4 = v.reshape(B, S, num_heads, d_head)

    if emit_probs:
        ctx4, attn_prob = attention_with_probs(q4, k4, v4)
    else:
        ctx4 = flash_attention(q4, k4, v4)
        attn_prob = None
    ctx = ctx4.reshape(M, D)

    # Output projection fused with residual-add + norm1.
    h1 = linear_add_layernorm(ctx, p["wo"], p["bo"], xf, p["g1"], p["be1"], eps)

    # Fully fused FFN (dropout = identity) with residual-add + norm2.
    out = ffn_fused(h1, p["w1"], p["b1"], p["w2"], p["b2"], h1,
                    p["g2"], p["be2"], eps)
    return out.reshape(B, S, D), attn_prob


def encoder_forward(params, tokens, num_heads, eps=1e-5):
    """tokens: (B, S) int32 -> (outputs (B,S,D) f32, attn_prob of last layer)."""
    B, S = tokens.shape
    emb = jnp.take(params["embedding"], tokens, axis=0)          # (B, S, D) gather
    x = (emb + params["pos_enc"][:S][None, :, :]).astype(jnp.bfloat16)
    attn_prob = None
    n = len(params["layers"])
    for i, layer_p in enumerate(params["layers"]):
        x, prob = encoder_layer(layer_p, x, num_heads, eps,
                                emit_probs=(i == n - 1))
        if prob is not None:
            attn_prob = prob
    return x.astype(jnp.float32), attn_prob


# -----------------------------------------------------------------------------
# Main
# -----------------------------------------------------------------------------
if __name__ == "__main__":
    # Small, shape-consistent config (scaled-down from the 512/2048/8 defaults).
    VOCAB = 100
    NUM_LAYERS = 2
    MAX_LEN = 16
    EMBED_DIM = 32
    FFN_DIM = 64
    NUM_HEADS = 4
    B, S = 2, 8

    key = jax.random.PRNGKey(0)
    pkey, tkey = jax.random.split(key)
    params = init_params(pkey, VOCAB, NUM_LAYERS, MAX_LEN, EMBED_DIM, FFN_DIM,
                         NUM_HEADS)
    tokens = jax.random.randint(tkey, (B, S), 0, VOCAB, dtype=jnp.int32)

    outputs, attn_prob = encoder_forward(params, tokens, NUM_HEADS)
    jax.block_until_ready(outputs)
    jax.block_until_ready(attn_prob)

    assert outputs.shape == (B, S, EMBED_DIM)
    assert attn_prob.shape == (B, NUM_HEADS, S, S)
    assert bool(jnp.all(jnp.isfinite(outputs)))
    # softmax rows of the (last layer's) attention probabilities must sum to 1
    assert bool(jnp.allclose(jnp.sum(attn_prob, axis=-1), 1.0, atol=1e-5))

    print("KERNEL_OK")
</pallas_src>

<mosaic_0001>
module attributes {stable_mosaic.version = 11 : i64} {
  func.func @_qkv_kernel(%arg0: i32, %arg1: memref<16x32xbf16, #tpu.memory_space<vmem>>, %arg2: memref<32x96xbf16, #tpu.memory_space<vmem>>, %arg3: memref<1x96xf32, #tpu.memory_space<vmem>>, %arg4: memref<16x32xbf16, #tpu.memory_space<vmem>>, %arg5: memref<16x32xbf16, #tpu.memory_space<vmem>>, %arg6: memref<16x32xbf16, #tpu.memory_space<vmem>>) attributes {dimension_semantics = [#tpu.dimension_semantics<parallel>], iteration_bounds = array<i64: 1>, scalar_prefetch = 0 : i64, scratch_operands = 0 : i64, tpu.core_type = #tpu.core_type<tc>, window_params = [{transform_indices = @transform_0, window_bounds = array<i64: 16, 32>}, {pipeline_mode = #tpu.pipeline_mode<synchronous>, transform_indices = @transform_1, window_bounds = array<i64: 32, 96>}, {pipeline_mode = #tpu.pipeline_mode<synchronous>, transform_indices = @transform_2, window_bounds = array<i64: 1, 96>}, {transform_indices = @transform_3, window_bounds = array<i64: 16, 32>}, {transform_indices = @transform_4, window_bounds = array<i64: 16, 32>}, {transform_indices = @transform_5, window_bounds = array<i64: 16, 32>}]} {
    %c0 = arith.constant 0 : index
    %c0_0 = arith.constant 0 : index
    %0 = vector.load %arg1[%c0, %c0_0] : memref<16x32xbf16, #tpu.memory_space<vmem>>, vector<16x32xbf16>
    %c0_1 = arith.constant 0 : index
    %c0_2 = arith.constant 0 : index
    %1 = vector.load %arg2[%c0_1, %c0_2] : memref<32x96xbf16, #tpu.memory_space<vmem>>, vector<32x96xbf16>
    %cst = arith.constant dense<0.000000e+00> : vector<16x96xf32>
    %2 = tpu.matmul %0, %1, %cst {dimension_numbers = #tpu.dot_dimension_numbers<[1], [0], [0], [1], [0, 0, 1, 1], [], []>} : vector<16x32xbf16>, vector<32x96xbf16>, vector<16x96xf32> -> vector<16x96xf32>
    %c0_3 = arith.constant 0 : index
    %c0_4 = arith.constant 0 : index
    %3 = vector.load %arg3[%c0_3, %c0_4] : memref<1x96xf32, #tpu.memory_space<vmem>>, vector<1x96xf32>
    %4 = vector.broadcast %3 : vector<1x96xf32> to vector<16x96xf32>
    %5 = arith.addf %2, %4 : vector<16x96xf32>
    %6 = vector.extract_strided_slice %5 {offsets = [0, 0], sizes = [16, 32], strides = [1, 1]} : vector<16x96xf32> to vector<16x32xf32>
    %cst_5 = arith.constant 0.353553385 : f32
    %7 = vector.broadcast %cst_5 : f32 to vector<16x32xf32>
    %8 = arith.mulf %6, %7 : vector<16x32xf32>
    %9 = arith.truncf %8 : vector<16x32xf32> to vector<16x32xbf16>
    %c0_6 = arith.constant 0 : index
    %c0_7 = arith.constant 0 : index
    %10 = vector.load %arg4[%c0_6, %c0_7] : memref<16x32xbf16, #tpu.memory_space<vmem>>, vector<16x32xbf16>
    tpu.vector_store %arg4[%c0_6, %c0_7], %9 {strides = array<i32>} : memref<16x32xbf16, #tpu.memory_space<vmem>>, vector<16x32xbf16>,
    %11 = vector.extract_strided_slice %5 {offsets = [0, 32], sizes = [16, 32], strides = [1, 1]} : vector<16x96xf32> to vector<16x32xf32>
    %12 = arith.truncf %11 : vector<16x32xf32> to vector<16x32xbf16>
    %c0_8 = arith.constant 0 : index
    %c0_9 = arith.constant 0 : index
    %13 = vector.load %arg5[%c0_8, %c0_9] : memref<16x32xbf16, #tpu.memory_space<vmem>>, vector<16x32xbf16>
    tpu.vector_store %arg5[%c0_8, %c0_9], %12 {strides = array<i32>} : memref<16x32xbf16, #tpu.memory_space<vmem>>, vector<16x32xbf16>,
    %14 = vector.extract_strided_slice %5 {offsets = [0, 64], sizes = [16, 32], strides = [1, 1]} : vector<16x96xf32> to vector<16x32xf32>
    %15 = arith.truncf %14 : vector<16x32xf32> to vector<16x32xbf16>
    %c0_10 = arith.constant 0 : index
    %c0_11 = arith.constant 0 : index
    %16 = vector.load %arg6[%c0_10, %c0_11] : memref<16x32xbf16, #tpu.memory_space<vmem>>, vector<16x32xbf16>
    tpu.vector_store %arg6[%c0_10, %c0_11], %15 {strides = array<i32>} : memref<16x32xbf16, #tpu.memory_space<vmem>>, vector<16x32xbf16>,
    return
  }
  func.func @transform_0(%arg0: i32) -> (i32, i32) {
    %c0_i32 = arith.constant 0 : i32
    %c0_i32_0 = arith.constant 0 : i32
    return %arg0, %c0_i32 : i32, i32
  }
  func.func @transform_1(%arg0: i32) -> (i32, i32) {
    %c0_i32 = arith.constant 0 : i32
    %c0_i32_0 = arith.constant 0 : i32
    %c0_i32_1 = arith.constant 0 : i32
    return %c0_i32, %c0_i32_0 : i32, i32
  }
  func.func @transform_2(%arg0: i32) -> (i32, i32) {
    %c0_i32 = arith.constant 0 : i32
    %c0_i32_0 = arith.constant 0 : i32
    %c0_i32_1 = arith.constant 0 : i32
    return %c0_i32, %c0_i32_0 : i32, i32
  }
  func.func @transform_3(%arg0: i32) -> (i32, i32) {
    %c0_i32 = arith.constant 0 : i32
    %c0_i32_0 = arith.constant 0 : i32
    return %arg0, %c0_i32 : i32, i32
  }
  func.func @transform_4(%arg0: i32) -> (i32, i32) {
    %c0_i32 = arith.constant 0 : i32
    %c0_i32_0 = arith.constant 0 : i32
    return %arg0, %c0_i32 : i32, i32
  }
  func.func @transform_5(%arg0: i32) -> (i32, i32) {
    %c0_i32 = arith.constant 0 : i32
    %c0_i32_0 = arith.constant 0 : i32
    return %arg0, %c0_i32 : i32, i32
  }
}

</mosaic_0001>

<llo_original>
// kernel: tpu_custom_call.1
$region0: #{tpu_custom_call.1}
  #allocation0 [shape = 'u32[]', space=smem, size = 0x4, offset = 0x4, fixed_abs, tag = 'smem constant byte address 0x4 - core index']
  #allocation1 [shape = 'u32[144,128]{1,0:T(1,128)}', space=vmem, size = 0x12000, scoped, tag = 'internal scratch']
  %s0 = inlined_call_operand.hbm [shape: bf16[16,32], index: 0, kind: input, shape index: {}]
  %s1 = inlined_call_operand.hbm [shape: bf16[32,96], index: 1, kind: input, shape index: {}]
  %s2 = inlined_call_operand.vmem [shape: f32[1,96], index: 2, kind: input, shape index: {}]
  %s3 = inlined_call_operand.hbm [shape: bf16[16,32], index: 3, kind: output, shape index: {0}]
  %s4 = inlined_call_operand.hbm [shape: bf16[16,32], index: 4, kind: output, shape index: {1}]
  %s5 = inlined_call_operand.hbm [shape: bf16[16,32], index: 5, kind: output, shape index: {2}]
  %6 = xla_tuple %s3, %s4, %s5
  %s7 = sld [smem:[#allocation0]]
  $region46: #{tpu_custom_call.1} parent=0
    _
  %s9 = ssub.s32 1, %s7
  %s10 = scalar_select 0, %s9, %s7
  $region1: #{tpu_custom_call.1} parent=0
    #allocation2 [shape = 'u8[4096]{0}', space=vmem, size = 0x1000, scoped, tag = 'input window, operand 0, single buffered']
    #allocation3 [shape = 's32[1]{0}', space=sflag, size = 0x4, scoped, tag = 'scoped memory for tpu_custom_call.1']
    #allocation4 [shape = 's32[1]{0}', space=sflag, size = 0x4, scoped, tag = 'scoped memory for tpu_custom_call.1']
    #allocation5 [shape = 'u8[8192]{0}', space=vmem, size = 0x2000, scoped, tag = 'input window, operand 1, single buffered']
    #allocation6 [shape = 's32[1]{0}', space=sflag, size = 0x4, scoped, tag = 'scoped memory for tpu_custom_call.1']
    #allocation7 [shape = 'u8[4096]{0}', space=vmem, size = 0x1000, scoped, tag = 'output window, operand 0, single buffered']
    #allocation8 [shape = 'u8[4096]{0}', space=vmem, size = 0x1000, scoped, tag = 'output window, operand 1, single buffered']
    #allocation9 [shape = 's32[1]{0}', space=sflag, size = 0x4, scoped, tag = 'scoped memory for tpu_custom_call.1']
    #allocation10 [shape = 'u8[4096]{0}', space=vmem, size = 0x1000, scoped, tag = 'output window, operand 2, single buffered']
    %11 = vsyncpa [#allocation3], 0
    %12 = vsyncpa [#allocation6], 0
    %13 = vsyncpa [#allocation4], 0
    %14 = vsyncpa [#allocation9], 0
    // Predicated region
    $region2: #{tpu_custom_call.1} parent=1 // pred_check
      _
    $region3: #{tpu_custom_call.1} parent=1 // pred_check_branch
      %16 = sbr.rel (0) target = $region5
    $region4: #{tpu_custom_call.1} parent=1 // pred_region
      %s18 = ssub.s32 128, 128
      %19 = vsyncadd [#allocation3], %s18
      %s20 = sshll.u32 [#allocation2], 4
      %s21 = int_to_ptr.vmem [resolvable:$true] %s20
      %26 = dma.hbm_to_vmem [thread:$0]  %s0, 128, %s21, [#allocation3], 64, 64, 4
    $region5: #{tpu_custom_call.1} parent=1 // pred_fallthru
      _
    // Predicated region
    $region6: #{tpu_custom_call.1} parent=1 // pred_check
      _
    $region7: #{tpu_custom_call.1} parent=1 // pred_check_branch
      %28 = sbr.rel (0) target = $region9
    $region8: #{tpu_custom_call.1} parent=1 // pred_region
      %s30 = ssub.s32 256, 256
      %31 = vsyncadd [#allocation6], %s30
      %s32 = sshll.u32 [#allocation5], 4
      %s33 = int_to_ptr.vmem [resolvable:$true] %s32
      %38 = dma.hbm_to_vmem [thread:$0]  %s1, 256, %s33, [#allocation6], 64, 64, 4
    $region9: #{tpu_custom_call.1} parent=1 // pred_fallthru
      _
    // Predicated region
    $region10: #{tpu_custom_call.1} parent=1 // pred_check
      _
    $region11: #{tpu_custom_call.1} parent=1 // pred_check_branch
      %40 = sbr.rel (0) target = $region13
    $region12: #{tpu_custom_call.1} parent=1 // pred_region
      _
    $region13: #{tpu_custom_call.1} parent=1 // pred_fallthru
      _
    // Predicated region
    $region14: #{tpu_custom_call.1} parent=1 // pred_check
      _
    $region15: #{tpu_custom_call.1} parent=1 // pred_check_branch
      %42 = sbr.rel (0) target = $region17
    $region16: #{tpu_custom_call.1} parent=1 // pred_region
      %43 = dma.done [#allocation3], 128
    $region17: #{tpu_custom_call.1} parent=1 // pred_fallthru
      _
    // Predicated region
    $region18: #{tpu_custom_call.1} parent=1 // pred_check
      _
    $region19: #{tpu_custom_call.1} parent=1 // pred_check_branch
      %45 = sbr.rel (0) target = $region21
    $region20: #{tpu_custom_call.1} parent=1 // pred_region
      %46 = dma.done [#allocation6], 256
    $region21: #{tpu_custom_call.1} parent=1 // pred_fallthru
      _
    %v48 = vld [vmem:[#allocation2] sm:$0xf]
    %v49 = vld [vmem:[#allocation2 + $0x4] sm:$0xf]
    %v50 = vld [vmem:[#allocation5] sm:$0xf]
    %v51 = vld [vmem:[#allocation5 + $0x4] sm:$0xf]
    %v52 = vld [vmem:[#allocation5 + $0x8] sm:$0xf]
    %v53 = vld [vmem:[#allocation5 + $0xc] sm:$0xf]
    %v54 = vld [vmem:[%s2] sm:$0x1]
    %v56 = vlaneseq
    %v57 = vshrl.u32 %v56, 7
    %v58 = vsub.s32 0, %v57
    %v59 = vrot.slane %v54, %v58
    %v63 = vunpack.c.l.b16 %v48
    %v64 = vunpack.c.l.b16 %v49
    %v65 = vpack.c.b16 %v64, %v63
    %v70 = vunpack.c.l.b16 %v50
    %v71 = vunpack.c.l.b16 %v51
    %v72 = vunpack.c.l.b16 %v52
    %v73 = vunpack.c.l.b16 %v53
    %v74 = vpack.c.b16 %v71, %v70
    %v75 = vpack.c.b16 %v73, %v72
    %vm78 = vcmask 261120
    %v80 = vsel %vm78, %v65, 0
    %82 = vmatprep.subr.bf16.mxu0 0
    %83 = vmatpush1.bf16.msra.mxu0 0
    %84 = vmatprep.subr.bf16.mxu0 0
    %85 = vmatpush1.bf16.msra.mxu0 0
    %86 = vmatprep.subr.bf16.mxu0 0
    %87 = vmatpush1.bf16.msra.mxu0 0
    %88 = vmatprep.subr.bf16.mxu0 0
    %89 = vmatpush1.bf16.msra.mxu0 0
    %90 = vmatprep.subr.bf16.mxu0 0
    %91 = vmatpush1.bf16.msra.mxu0 0
    %92 = vmatprep.subr.bf16.mxu0 0
    %93 = vmatpush1.bf16.msra.mxu0 0
    %94 = vmatprep.subr.bf16.mxu0 0
    %95 = vmatpush1.bf16.msra.mxu0 %v75
    %96 = vmatprep.subr.bf16.mxu0 0
    %97 = vmatpush1.bf16.msra.mxu0 %v74
    %98 = vmatprep.subr.bf16.mxu0 0
    %99 = vmatpush2.bf16.msra.mxu0 0
    %100 = vmatprep.subr.bf16.mxu0 0
    %101 = vmatpush2.bf16.msra.mxu0 0
    %102 = vmatprep.subr.bf16.mxu0 0
    %103 = vmatpush2.bf16.msra.mxu0 0
    %104 = vmatprep.subr.bf16.mxu0 0
    %105 = vmatpush2.bf16.msra.mxu0 0
    %106 = vmatprep.subr.bf16.mxu0 0
    %107 = vmatpush2.bf16.msra.mxu0 0
    %108 = vmatprep.subr.bf16.mxu0 0
    %109 = vmatpush2.bf16.msra.mxu0 0
    %110 = vmatprep.subr.bf16.mxu0 0
    %111 = vmatpush2.bf16.msra.mxu0 0
    %112 = vmatprep.subr.bf16.mxu0 0
    %113 = vmatpush2.bf16.msra.mxu0 0
    %114 = vmatprep.mubr.bf16.mxu0 0
    %115 = vmatmul.mubr.bf16.gmra.mxu0 %v80
    %v116 = vpop.f32.mrf.mxu0
    %v117 = vadd.f32 %v59, %v116
    %v118 = vpop.f32.mrf.mxu0
    %v119 = vpop.f32.mrf.mxu0
    %v120 = vadd.f32 %v59, %v119
    %v121 = vpop.f32.mrf.mxu0
    %122 = vdwg.mxu0
    %v123 = vmul.f32 %v117, 0.35355338
    %v124 = vmul.f32 %v120, 0.35355338
    %v125 = vpack.c.bf16 %v124, %v123
    %v127 = vunpack.c.l.b16 %v125
    %v128 = vunpack.c.h.b16 %v125
    %v129 = vpack.c.b16 %v127, %v127
    %v130 = vpack.c.b16 %v128, %v128
    %vm133 = vcmask 257024
    %134 = vst.msk [vmem:[#allocation7] sm:$0xf] %vm133, %v129
    %135 = vst.msk [vmem:[#allocation7 + $0x4] sm:$0xf] %vm133, %v130
    %v136 = vpack.c.bf16 %v120, %v117
    %v138 = vunpack.c.l.b16 %v136
    %v139 = vunpack.c.h.b16 %v136
    %v140 = vpack.c.b16 %v138, %v138
    %v141 = vpack.c.b16 %v139, %v139
    %142 = vrot.lane.b32.xlu0 %v140, 96
    %v143 = vpop.permute.xlu0 %142
    %144 = vrot.lane.b32.xlu0 %v141, 96
    %v145 = vpop.permute.xlu0 %144
    %148 = vst.msk [vmem:[#allocation8] sm:$0xf] %vm133, %v143
    %149 = vst.msk [vmem:[#allocation8 + $0x4] sm:$0xf] %vm133, %v145
    %150 = vrot.lane.b32.xlu0 %v140, 64
    %v151 = vpop.permute.xlu0 %150
    %152 = vrot.lane.b32.xlu0 %v141, 64
    %v153 = vpop.permute.xlu0 %152
    %156 = vst.msk [vmem:[#allocation10] sm:$0xf] %vm133, %v151
    %157 = vst.msk [vmem:[#allocation10 + $0x4] sm:$0xf] %vm133, %v153
    // Predicated region
    $region22: #{tpu_custom_call.1} parent=1 // pred_check
      _
    $region23: #{tpu_custom_call.1} parent=1 // pred_check_branch
      %159 = sbr.rel (0) target = $region25
    $region24: #{tpu_custom_call.1} parent=1 // pred_region
      %s161 = ssub.s32 128, 128
      %162 = vsyncadd [#allocation4], %s161
      %s163 = sshll.u32 [#allocation7], 4
      %s164 = int_to_ptr.vmem [resolvable:$true] %s163
      %169 = dma.vmem_to_hbm [thread:$0]  %s164, 128, %s3, [#allocation4], 64, 64, 4
    $region25: #{tpu_custom_call.1} parent=1 // pred_fallthru
      _
    // Predicated region
    $region26: #{tpu_custom_call.1} parent=1 // pred_check
      _
    $region27: #{tpu_custom_call.1} parent=1 // pred_check_branch
      %171 = sbr.rel (0) target = $region29
    $region28: #{tpu_custom_call.1} parent=1 // pred_region
      %s173 = ssub.s32 128, 128
      %174 = vsyncadd [#allocation9], %s173
      %s175 = sshll.u32 [#allocation8], 4
      %s176 = int_to_ptr.vmem [resolvable:$true] %s175
      %181 = dma.vmem_to_hbm [thread:$0]  %s176, 128, %s4, [#allocation9], 64, 64, 4
    $region29: #{tpu_custom_call.1} parent=1 // pred_fallthru
      _
    // Predicated region
    $region30: #{tpu_custom_call.1} parent=1 // pred_check
      _
    $region31: #{tpu_custom_call.1} parent=1 // pred_check_branch
      %183 = sbr.rel (0) target = $region33
    $region32: #{tpu_custom_call.1} parent=1 // pred_region
      %s185 = ssub.s32 128, 128
      %186 = vsyncadd [#allocation9], %s185
      %s187 = sshll.u32 [#allocation10], 4
      %s188 = int_to_ptr.vmem [resolvable:$true] %s187
      %193 = dma.vmem_to_hbm [thread:$0]  %s188, 128, %s5, [#allocation9], 64, 64, 4
    $region33: #{tpu_custom_call.1} parent=1 // pred_fallthru
      _
    // Predicated region
    $region34: #{tpu_custom_call.1} parent=1 // pred_check
      _
    $region35: #{tpu_custom_call.1} parent=1 // pred_check_branch
      %195 = sbr.rel (0) target = $region37
    $region36: #{tpu_custom_call.1} parent=1 // pred_region
      %196 = dma.done [#allocation4], 128
    $region37: #{tpu_custom_call.1} parent=1 // pred_fallthru
      _
    // Predicated region
    $region38: #{tpu_custom_call.1} parent=1 // pred_check
      _
    $region39: #{tpu_custom_call.1} parent=1 // pred_check_branch
      %198 = sbr.rel (0) target = $region41
    $region40: #{tpu_custom_call.1} parent=1 // pred_region
      %199 = dma.done [#allocation9], 128
    $region41: #{tpu_custom_call.1} parent=1 // pred_fallthru
      _
    // Predicated region
    $region42: #{tpu_custom_call.1} parent=1 // pred_check
      _
    $region43: #{tpu_custom_call.1} parent=1 // pred_check_branch
      %201 = sbr.rel (0) target = $region45
    $region44: #{tpu_custom_call.1} parent=1 // pred_region
      %202 = dma.done [#allocation9], 128
    $region45: #{tpu_custom_call.1} parent=1 // pred_fallthru
      _
    %203 = vsyncpa [#allocation3], 1
    %204 = vsyncpa [#allocation6], 1
    %205 = vsyncpa [#allocation4], 1
    %206 = vsyncpa [#allocation9], 1

</llo_original>
